<compile_context>
chip_gen: v6e
topology: v6e:2x2x1
jax: 0.10.0
libtpu: 0.0.40
codegen_flags: <defaults>
</compile_context>

<pallas_src>
import jax
import jax.numpy as jnp
from jax.experimental import pallas as pl
from jax.experimental.pallas import tpu as pltpu


def _mbstd_kernel(x_ref, out_ref):
    # x_ref  : (N, C,   T)  one lane-tile of the flattened spatial axis, VMEM
    # out_ref: (N, C+1, T)
    x = x_ref[...]
    n, c, t = x.shape
    xf = x.astype(jnp.float32)  # compute std in f32 even for low-precision inputs

    # --- adjusted std over the batch dimension (two-pass, matches torch) ---
    mean_n = jnp.mean(xf, axis=0)                       # (C, T)
    centered = xf - mean_n[None]                        # (N, C, T)
    var_n = jnp.mean(centered * centered, axis=0)       # (C, T)
    std_n = jnp.sqrt(var_n + jnp.float32(1e-8))         # (C, T)

    # --- mean over channels -> one stat per spatial position (cheap reduce) ---
    stat = jnp.mean(std_n, axis=0, keepdims=True)       # (1, T)

    # --- lane-dense stores: pass-through x, then the broadcast stat channel ---
    out_ref[:, :c, :] = x
    out_ref[:, c:, :] = jnp.broadcast_to(stat[None], (n, 1, t)).astype(out_ref.dtype)


def _vmem_plan():
    """Return (vmem_limit_bytes, data_budget_bytes) sized per TPU generation."""
    try:
        cap = int(pltpu.get_tpu_info().vmem_capacity_bytes)
    except Exception:
        cap = 64 * 1024 * 1024  # conservative (v7x-sized) fallback
    # v7x (64 MiB VMEM)  -> limit 48 MiB, data budget 24 MiB (small lane tiles)
    # v5e/v6e (128 MiB)  -> limit 96 MiB, data budget 48 MiB (large lane tiles)
    vmem_limit = min(cap * 3 // 4, 96 * 1024 * 1024)
    return vmem_limit, vmem_limit // 2


def _pick_tile_hw(n, c, hw, itemsize, budget_bytes):
    """Largest lane tile that is a multiple of 128, divides HW, and whose
    double-buffered (input + output) blocks fit in budget_bytes."""
    if hw % 128 != 0:
        # Full-extent block is always legal ("equal to full array dim").
        return hw
    bytes_per_lane = 2 * (n * c + n * (c + 1)) * itemsize  # 2 = double buffer
    max_lanes = max(128, (budget_bytes // bytes_per_lane) // 128 * 128)
    tile = min(max_lanes, hw)
    while hw % tile != 0:
        tile -= 128
    return tile


def minibatch_stat_concat(x):
    """PGGAN MinibatchStatConcatLayer forward. x: (N, C, H, W) -> (N, C+1, H, W)."""
    N, C, H, W = x.shape
    HW = H * W
    x_flat = x.reshape(N, C, HW)

    vmem_limit, data_budget = _vmem_plan()
    tile = _pick_tile_hw(N, C, HW, x.dtype.itemsize, data_budget)
    grid = (HW // tile,)

    out_flat = pl.pallas_call(
        _mbstd_kernel,
        out_shape=jax.ShapeDtypeStruct((N, C + 1, HW), x.dtype),
        grid=grid,
        in_specs=[pl.BlockSpec((N, C, tile), lambda i: (0, 0, i))],
        out_specs=pl.BlockSpec((N, C + 1, tile), lambda i: (0, 0, i)),
        compiler_params=pltpu.CompilerParams(
            dimension_semantics=("parallel",),   # HW tiles are independent; shards across v7x's 2 TCs
            vmem_limit_bytes=vmem_limit,
        ),
    )(x_flat)

    return out_flat.reshape(N, C + 1, H, W)


def _reference(x):
    mean_n = jnp.mean(x, axis=0, keepdims=True)
    std_n = jnp.sqrt(jnp.mean((x - mean_n) ** 2, axis=0, keepdims=True) + 1e-8)
    stat = jnp.mean(std_n, axis=1, keepdims=True)            # (1, 1, H, W)
    vals = jnp.broadcast_to(stat, (x.shape[0], 1) + x.shape[2:])
    return jnp.concatenate([x, vals], axis=1)


if __name__ == "__main__":
    key = jax.random.PRNGKey(0)
    x = jax.random.normal(key, (2, 4, 16, 16), dtype=jnp.float32)  # NCHW

    out = jax.block_until_ready(minibatch_stat_concat(x))

    ref = _reference(x)
    assert out.shape == (2, 5, 16, 16), out.shape
    assert jnp.allclose(out, ref, atol=1e-5, rtol=1e-5), "mismatch vs reference"

    print("KERNEL_OK")
</pallas_src>

<mosaic_0001>
module attributes {stable_mosaic.version = 11 : i64} {
  func.func @_mbstd_kernel(%arg0: i32, %arg1: memref<2x4x256xf32, #tpu.memory_space<vmem>>, %arg2: memref<2x5x256xf32, #tpu.memory_space<vmem>>) attributes {dimension_semantics = [#tpu.dimension_semantics<parallel>], iteration_bounds = array<i64: 1>, scalar_prefetch = 0 : i64, scratch_operands = 0 : i64, tpu.core_type = #tpu.core_type<tc>, window_params = [{transform_indices = @transform_0, window_bounds = array<i64: 2, 4, 256>}, {transform_indices = @transform_1, window_bounds = array<i64: 2, 5, 256>}]} {
    %c0 = arith.constant 0 : index
    %c0_0 = arith.constant 0 : index
    %c0_1 = arith.constant 0 : index
    %0 = vector.load %arg1[%c0, %c0_0, %c0_1] : memref<2x4x256xf32, #tpu.memory_space<vmem>>, vector<2x4x256xf32>
    %cst = arith.constant dense<0.000000e+00> : vector<4x256xf32>
    %1 = vector.multi_reduction <add>, %0, %cst [0] : vector<2x4x256xf32> to vector<4x256xf32>
    %cst_2 = arith.constant 2.000000e+00 : f32
    %2 = vector.broadcast %cst_2 : f32 to vector<4x256xf32>
    %3 = arith.divf %1, %2 : vector<4x256xf32>
    %4 = vector.shape_cast %3 : vector<4x256xf32> to vector<1x4x256xf32>
    %5 = vector.broadcast %4 : vector<1x4x256xf32> to vector<2x4x256xf32>
    %6 = arith.subf %0, %5 : vector<2x4x256xf32>
    %7 = arith.mulf %6, %6 : vector<2x4x256xf32>
    %cst_3 = arith.constant dense<0.000000e+00> : vector<4x256xf32>
    %8 = vector.multi_reduction <add>, %7, %cst_3 [0] : vector<2x4x256xf32> to vector<4x256xf32>
    %cst_4 = arith.constant 2.000000e+00 : f32
    %9 = vector.broadcast %cst_4 : f32 to vector<4x256xf32>
    %10 = arith.divf %8, %9 : vector<4x256xf32>
    %cst_5 = arith.constant 9.99999993E-9 : f32
    %11 = vector.broadcast %cst_5 : f32 to vector<4x256xf32>
    %12 = arith.addf %10, %11 : vector<4x256xf32>
    %13 = math.sqrt %12 : vector<4x256xf32>
    %cst_6 = arith.constant dense<0.000000e+00> : vector<256xf32>
    %14 = vector.multi_reduction <add>, %13, %cst_6 [0] : vector<4x256xf32> to vector<256xf32>
    %15 = vector.shape_cast %14 : vector<256xf32> to vector<1x256xf32>
    %cst_7 = arith.constant 4.000000e+00 : f32
    %16 = vector.broadcast %cst_7 : f32 to vector<1x256xf32>
    %17 = arith.divf %15, %16 : vector<1x256xf32>
    %c0_8 = arith.constant 0 : index
    %c0_9 = arith.constant 0 : index
    %c0_10 = arith.constant 0 : index
    %18 = vector.load %arg2[%c0_8, %c0_9, %c0_10] : memref<2x5x256xf32, #tpu.memory_space<vmem>>, vector<2x4x256xf32>
    tpu.vector_store %arg2[%c0_8, %c0_9, %c0_10], %0 {strides = array<i32>} : memref<2x5x256xf32, #tpu.memory_space<vmem>>, vector<2x4x256xf32>,
    %19 = vector.shape_cast %17 : vector<1x256xf32> to vector<1x1x256xf32>
    %20 = vector.shape_cast %19 : vector<1x1x256xf32> to vector<1x1x256xf32>
    %21 = vector.broadcast %20 : vector<1x1x256xf32> to vector<2x1x256xf32>
    %c0_11 = arith.constant 0 : index
    %c4 = arith.constant 4 : index
    %c0_12 = arith.constant 0 : index
    %22 = vector.load %arg2[%c0_11, %c4, %c0_12] : memref<2x5x256xf32, #tpu.memory_space<vmem>>, vector<2x1x256xf32>
    tpu.vector_store %arg2[%c0_11, %c4, %c0_12], %21 {strides = array<i32>} : memref<2x5x256xf32, #tpu.memory_space<vmem>>, vector<2x1x256xf32>,
    return
  }
  func.func @transform_0(%arg0: i32) -> (i32, i32, i32) {
    %c0_i32 = arith.constant 0 : i32
    %c0_i32_0 = arith.constant 0 : i32
    %c0_i32_1 = arith.constant 0 : i32
    return %c0_i32, %c0_i32_0, %arg0 : i32, i32, i32
  }
  func.func @transform_1(%arg0: i32) -> (i32, i32, i32) {
    %c0_i32 = arith.constant 0 : i32
    %c0_i32_0 = arith.constant 0 : i32
    %c0_i32_1 = arith.constant 0 : i32
    return %c0_i32, %c0_i32_0, %arg0 : i32, i32, i32
  }
}

</mosaic_0001>

<llo_original>
// kernel: tpu_custom_call.1
$region0: #{tpu_custom_call.1}
  #allocation0 [shape = 'u32[]', space=smem, size = 0x4, offset = 0x4, fixed_abs, tag = 'smem constant byte address 0x4 - core index']
  #allocation1 [shape = 'u32[144,128]{1,0:T(1,128)}', space=vmem, size = 0x12000, scoped, tag = 'internal scratch']
  %s0 = inlined_call_operand.hbm [shape: f32[2,4,256], index: 0, kind: input, shape index: {}]
  %s1 = inlined_call_operand.vmem [shape: f32[2,5,256], index: 1, kind: output, shape index: {}]
  %s2 = sld [smem:[#allocation0]]
  $region18: #{tpu_custom_call.1} parent=0
    _
  %s4 = ssub.s32 1, %s2
  %s5 = scalar_select 0, %s4, %s2
  $region1: #{tpu_custom_call.1} parent=0
    #allocation2 [shape = 'u8[8192]{0}', space=vmem, size = 0x2000, scoped, tag = 'input window, operand 0, single buffered']
    #allocation3 [shape = 's32[1]{0}', space=sflag, size = 0x4, scoped, tag = 'scoped memory for tpu_custom_call.1']
    %6 = vsyncpa [#allocation3], 0
    // Predicated region
    $region2: #{tpu_custom_call.1} parent=1 // pred_check
      _
    $region3: #{tpu_custom_call.1} parent=1 // pred_check_branch
      %8 = sbr.rel (0) target = $region5
    $region4: #{tpu_custom_call.1} parent=1 // pred_region
      %s10 = ssub.s32 256, 256
      %11 = vsyncadd [#allocation3], %s10
      %s12 = sshll.u32 [#allocation2], 4
      %s13 = int_to_ptr.vmem [resolvable:$true] %s12
      %18 = dma.hbm_to_vmem [thread:$0]  %s0, 256, %s13, [#allocation3], 128, 128, 8
    $region5: #{tpu_custom_call.1} parent=1 // pred_fallthru
      _
    // Predicated region
    $region6: #{tpu_custom_call.1} parent=1 // pred_check
      _
    $region7: #{tpu_custom_call.1} parent=1 // pred_check_branch
      %20 = sbr.rel (0) target = $region9
    $region8: #{tpu_custom_call.1} parent=1 // pred_region
      %21 = dma.done [#allocation3], 256
    $region9: #{tpu_custom_call.1} parent=1 // pred_fallthru
      _
    %v22 = vld [vmem:[#allocation2] sm:$0xff]
    %v23 = vld [vmem:[#allocation2 + $0x8] sm:$0xff]
    %v26 = vcombine.high %v22, %v22
    %v27 = vcombine.high %v23, %v23
    %vm30 = vcmask 1043456
    %v31 = vsel %vm30, %v22, 0.0
    %v32 = vsel %vm30, %v23, 0.0
    %v33 = vadd.f32 %v31, %v32
    %v34 = vsel %vm30, %v26, 0.0
    %v35 = vsel %vm30, %v27, 0.0
    %v36 = vadd.f32 %v34, %v35
    %v37 = vrcp.pop 2.0
    %v38 = vmul.f32 %v33, %v37
    %v39 = vmul.f32 %v36, %v37
    %v42 = vcombine.low %v38, %v39
    %v44 = vsub.f32 %v22, %v42
    %v45 = vsub.f32 %v23, %v42
    %v46 = vmul.f32 %v44, %v44
    %v47 = vmul.f32 %v45, %v45
    %v50 = vcombine.high %v46, %v46
    %v51 = vcombine.high %v47, %v47
    %v54 = vsel %vm30, %v46, 0.0
    %v55 = vsel %vm30, %v47, 0.0
    %v56 = vadd.f32 %v54, %v55
    %v57 = vsel %vm30, %v50, 0.0
    %v58 = vsel %vm30, %v51, 0.0
    %v59 = vadd.f32 %v57, %v58
    %v60 = vmul.f32 %v56, %v37
    %v61 = vmul.f32 %v59, %v37
    %v62 = vadd.f32 %v60, 1e-08
    %v63 = vadd.f32 %v61, 1e-08
    %v64 = vrsqrt.pop %v62
    %v65 = vmul.f32 %v62, %v64
    %vm66 = vcmp.eq.f32.partialorder %v62, inf
    %v67 = vsel %vm66, %v62, %v65
    %vm68 = vcmp.eq.f32.partialorder %v62, 0.0
    %v69 = vand.u32 %v62, 2147483648
    %v70 = vsel %vm68, %v69, %v67
    %v71 = vrsqrt.pop %v63
    %v72 = vmul.f32 %v63, %v71
    %vm73 = vcmp.eq.f32.partialorder %v63, inf
    %v74 = vsel %vm73, %v63, %v72
    %vm75 = vcmp.eq.f32.partialorder %v63, 0.0
    %v76 = vand.u32 %v63, 2147483648
    %v77 = vsel %vm75, %v76, %v74
    %v78 = vsel %vm30, %v70, 0.0
    %v79 = vrot.slane %v78, 4
    %v80 = vadd.f32 %v78, %v79
    %v81 = vrot.slane %v80, 2
    %v82 = vadd.f32 %v80, %v81
    %v83 = vrot.slane %v82, 1
    %v84 = vadd.f32 %v82, %v83
    %v85 = vsel %vm30, %v77, 0.0
    %v86 = vrot.slane %v85, 4
    %v87 = vadd.f32 %v85, %v86
    %v88 = vrot.slane %v87, 2
    %v89 = vadd.f32 %v87, %v88
    %v90 = vrot.slane %v89, 1
    %v91 = vadd.f32 %v89, %v90
    %v92 = vrcp.pop 4.0
    %v93 = vmul.f32 %v84, %v92
    %v94 = vmul.f32 %v91, %v92
    %95 = vst [vmem:[%s1] sm:$0xf] %v22
    %96 = vst [vmem:[%s1 + $0x8] sm:$0xf] %v26
    %97 = vst [vmem:[%s1 + $0x10] sm:$0xf] %v23
    %98 = vst [vmem:[%s1 + $0x18] sm:$0xf] %v27
    %v101 = vcombine.low %v93, %v94
    %v103 = vunpack.c.l.s4 1966171168
    %v104 = vunpack.c.0.s8 %v103
    %v105 = vlaneseq
    %v106 = vshrl.u32 %v105, 7
    %v107 = vsub.s32 %v104, %v106
    %v108 = vrot.slane %v101, %v107
    %v110 = vunpack.c.l.s4 1966171168
    %v111 = vunpack.c.0.s8 %v110
    %v112 = vlaneseq
    %v113 = vshrl.u32 %v112, 7
    %v114 = vsub.s32 %v111, %v113
    %v115 = vrot.slane %v108, %v114
    %v117 = vlaneseq
    %vm118 = vcmp.ge.s32.totalorder %v117, 0
    %vm119 = vcmp.lt.s32.totalorder %v117, 256
    %vm120 = vmand %vm118, %vm119
    %s121 = scalar_lea.vmem %s1, 4
    %122 = vst.msk [vmem:[%s121] ss:$8 sm:$0x3] %vm120, %v115
    %123 = vst.msk [vmem:[%s121] ss:$8 sm:$0x0] %vm120, %v115
    %s124 = scalar_lea.vmem %s1, 20
    %125 = vst.msk [vmem:[%s124] ss:$8 sm:$0x3] %vm120, %v115
    %126 = vst.msk [vmem:[%s124] ss:$8 sm:$0x0] %vm120, %v115
    // Predicated region
    $region10: #{tpu_custom_call.1} parent=1 // pred_check
      _
    $region11: #{tpu_custom_call.1} parent=1 // pred_check_branch
      %128 = sbr.rel (0) target = $region13
    $region12: #{tpu_custom_call.1} parent=1 // pred_region
      _
    $region13: #{tpu_custom_call.1} parent=1 // pred_fallthru
      _
    // Predicated region
    $region14: #{tpu_custom_call.1} parent=1 // pred_check
      _
    $region15: #{tpu_custom_call.1} parent=1 // pred_check_branch
      %130 = sbr.rel (0) target = $region17
    $region16: #{tpu_custom_call.1} parent=1 // pred_region
      _
    $region17: #{tpu_custom_call.1} parent=1 // pred_fallthru
      _
    %131 = vsyncpa [#allocation3], 1

</llo_original>
